<compile_context>
chip_gen: v5e
topology: v5e:2x2
jax: 0.10.0
libtpu: 0.0.40
codegen_flags: <defaults>
</compile_context>

<pallas_src>
import jax
import jax.numpy as jnp
from jax import lax
from jax.experimental import pallas as pl
from jax.experimental.pallas import tpu as pltpu

_EPS = 1e-5  # PyTorch BatchNorm2d default eps


# ----------------------------------------------------------------------------
# Pallas kernel: one grid step == one block of NB batch elements.
#   p_ref : (MB, 9C)  bf16   im2col patches, rows = (n, h, w)
#   w1_ref: (9C, F)   bf16   conv weight with BN1 scale folded in
#   c_ref : (3, F)    f32    row 0 = t1 (BN1 shift + conv bias),
#                            row 1 = s0/HW (BN0 scale with avg-pool folded),
#                            row 2 = t0 (BN0 shift)
#   wl_ref: (F, KP)   f32    linear weight^T, zero-padded to 128 lanes
#   out_ref:(NB, KP)  f32
# ----------------------------------------------------------------------------
def _gate_kernel(p_ref, w1_ref, c_ref, wl_ref, out_ref):
    # conv0 (3x3, s1, p1) as a single im2col matmul (bf16 in, f32 acc);
    # BN scale + conv bias were pre-folded into w1 / t1.
    h1 = jnp.dot(p_ref[...], w1_ref[...],
                 preferred_element_type=jnp.float32)          # [MB, F]
    t1 = c_ref[0:1, :]
    h1 = jnp.maximum(h1 + t1, 0.0)                            # BN1 + ReLU

    # Global average pool as a layout-free split of the leading axis + sum
    # over HW (VPU adds + one sublane reduce).  1/(H*W) is folded into s0.
    mb, f = h1.shape
    nb = out_ref.shape[0]
    hw = mb // nb
    pooled = jnp.sum(h1.reshape(nb, hw, f), axis=1)           # [NB, F]

    # Second BatchNorm (folded scale/shift, incl. 1/HW) + ReLU, then Linear.
    s0 = c_ref[1:2, :]
    t0 = c_ref[2:3, :]
    z = jnp.maximum(pooled * s0 + t0, 0.0)                    # [NB, F]
    out_ref[...] = jnp.dot(z, wl_ref[...],
                           preferred_element_type=jnp.float32)  # [NB, KP]


# ----------------------------------------------------------------------------
# Plain-JAX glue
# ----------------------------------------------------------------------------
def _im2col_k3s1p1(x_nchw):
    """im2col for kernel=3, stride=1, padding=1. Returns [N, H*W, 9*C]."""
    N, C, H, W = x_nchw.shape
    x = jnp.transpose(x_nchw, (0, 2, 3, 1))                   # NHWC
    xp = jnp.pad(x, ((0, 0), (1, 1), (1, 1), (0, 0)))
    cols = []
    for kh in range(3):
        for kw in range(3):
            cols.append(xp[:, kh:kh + H, kw:kw + W, :])        # [N,H,W,C]
    p = jnp.stack(cols, axis=3)                                # [N,H,W,9,C]
    return p.reshape(N, H * W, 9 * C)


def _pick_batch_block(n, cap):
    """Largest batch block that keeps every BlockSpec (8,128)-legal.

    Returns either the whole batch (block == full array dim is always legal)
    or a multiple of 8 dividing N.  Note: for awkward N (prime/odd) this
    falls back to a single whole-batch block; vmem_limit_bytes is derived
    from the chosen block so the request is at least sized honestly.
    """
    if n <= cap:
        return n                              # whole batch in one step
    for d in range(cap - cap % 8, 7, -8):     # multiples of 8 that divide N
        if n % d == 0:
            return d
    return n                                  # fallback: single full block


def init_params(key, input_size, output_size=10):
    F = 64
    ks = jax.random.split(key, 11)
    f32 = jnp.float32
    return dict(
        conv_w=0.1 * jax.random.normal(ks[0], (F, input_size, 3, 3), f32),
        conv_b=0.1 * jax.random.normal(ks[1], (F,), f32),
        bn_gamma=1.0 + 0.1 * jax.random.normal(ks[2], (F,), f32),
        bn_beta=0.1 * jax.random.normal(ks[3], (F,), f32),
        bn_mean=0.1 * jax.random.normal(ks[4], (F,), f32),
        bn_var=1.0 + 0.1 * jnp.abs(jax.random.normal(ks[5], (F,), f32)),
        bn0_gamma=1.0 + 0.1 * jax.random.normal(ks[6], (F,), f32),
        bn0_beta=0.1 * jax.random.normal(ks[7], (F,), f32),
        bn0_mean=0.1 * jax.random.normal(ks[8], (F,), f32),
        bn0_var=1.0 + 0.1 * jnp.abs(jax.random.normal(ks[9], (F,), f32)),
        lin_w=0.02 * jax.random.normal(ks[10], (output_size, F), f32),
    )


def gate_cnn_forward(x, params, *, block_batch=64):
    N, C, H, W = x.shape
    F = params["conv_w"].shape[0]                 # 64
    K = params["lin_w"].shape[0]                  # output_size
    HW = H * W
    K9 = 9 * C
    LANE = 128
    KP = ((K + LANE - 1) // LANE) * LANE          # lane-padded output features

    NB = _pick_batch_block(N, block_batch)        # samples per grid step
    MB = NB * HW                                  # conv-matmul rows per step

    # im2col patches, pre-flattened to rows=(n,h,w), carried in bf16.
    patches = _im2col_k3s1p1(x).reshape(N * HW, K9).astype(jnp.bfloat16)

    # Fold conv bias + eval-mode BatchNorm into the conv weight / shift.
    s1 = params["bn_gamma"] / jnp.sqrt(params["bn_var"] + _EPS)
    w1m = jnp.transpose(params["conv_w"], (2, 3, 1, 0)).reshape(K9, F)
    w1f = (w1m * s1[None, :]).astype(jnp.bfloat16)                  # [9C, 64]
    t1 = params["bn_beta"] + (params["conv_b"] - params["bn_mean"]) * s1

    # Second BN (eval-mode) folded; the AvgPool 1/(H*W) factor folds into s0.
    s0 = params["bn0_gamma"] / jnp.sqrt(params["bn0_var"] + _EPS)
    t0 = params["bn0_beta"] - params["bn0_mean"] * s0
    s0_eff = s0 / float(HW)

    # One fused f32 constant: rows = [t1, s0/HW, t0].
    consts = jnp.stack([t1, s0_eff, t0], axis=0).astype(jnp.float32)  # [3, F]

    # Linear weight^T, zero-padded to 128 output lanes (lane-dense stores).
    wlT = jnp.zeros((F, KP), jnp.float32).at[:, :K].set(params["lin_w"].T)

    # Explicit scoped-VMEM budget from *lane-padded* tile sizes:
    #   patches: MB x pad(9C->128) bf16, double-buffered
    #   h1 temp: MB x pad(F->128)  f32
    #   output : NB x KP f32, double-buffered
    k9_pad = ((K9 + LANE - 1) // LANE) * LANE
    f_pad = ((F + LANE - 1) // LANE) * LANE
    vmem_bytes = (2 * MB * k9_pad * 2
                  + MB * f_pad * 4
                  + 2 * NB * KP * 4
                  + (2 << 20))                    # weights/consts/headroom
    vmem_bytes = int(min(max(vmem_bytes, 4 << 20), 64 << 20))  # v7x: 64 MiB/TC

    const_buf = pl.Buffered(1)   # constant index_map -> single buffer suffices

    out = pl.pallas_call(
        _gate_kernel,
        out_shape=jax.ShapeDtypeStruct((N, KP), jnp.float32),
        grid_spec=pltpu.PrefetchScalarGridSpec(
            num_scalar_prefetch=0,
            grid=(N // NB,),
            in_specs=[
                pl.BlockSpec((MB, K9), lambda i: (i, 0)),       # patches block
                pl.BlockSpec((K9, F), lambda i: (0, 0),
                             pipeline_mode=const_buf),          # folded conv w
                pl.BlockSpec((3, F), lambda i: (0, 0),
                             pipeline_mode=const_buf),          # t1/s0/t0
                pl.BlockSpec((F, KP), lambda i: (0, 0),
                             pipeline_mode=const_buf),          # linear w^T
            ],
            out_specs=pl.BlockSpec((NB, KP), lambda i: (i, 0)),
        ),
        compiler_params=pltpu.CompilerParams(
            dimension_semantics=("parallel",),
            vmem_limit_bytes=vmem_bytes),
    )(patches, w1f, consts, wlT)
    return out[:, :K]


# ----------------------------------------------------------------------------
# Pure-JAX reference (NCHW, lax.conv) for correctness check
# ----------------------------------------------------------------------------
def reference_forward(x, params):
    def bn(y, g, b, m, v):
        return (g[None, :, None, None] * (y - m[None, :, None, None])
                / jnp.sqrt(v[None, :, None, None] + _EPS)
                + b[None, :, None, None])

    y = lax.conv_general_dilated(
        x, params["conv_w"], window_strides=(1, 1),
        padding=((1, 1), (1, 1)),
        dimension_numbers=("NCHW", "OIHW", "NCHW"))
    y = y + params["conv_b"][None, :, None, None]
    y = jax.nn.relu(bn(y, params["bn_gamma"], params["bn_beta"],
                       params["bn_mean"], params["bn_var"]))
    p = jnp.mean(y, axis=(2, 3), keepdims=True)          # AvgPool2d((H, W))
    p = jax.nn.relu(bn(p, params["bn0_gamma"], params["bn0_beta"],
                       params["bn0_mean"], params["bn0_var"]))
    feat = p.reshape(x.shape[0], -1)
    return feat @ params["lin_w"].T                       # Linear, no bias


if __name__ == "__main__":
    key = jax.random.PRNGKey(0)
    kx, kp = jax.random.split(key)
    N, C, H, W, K = 2, 4, 16, 16, 10    # x: [N, input_size, height, width]
    x = jax.random.normal(kx, (N, C, H, W), jnp.float32)
    params = init_params(kp, input_size=C, output_size=K)

    out = gate_cnn_forward(x, params)
    out = jax.block_until_ready(out)

    ref = reference_forward(x, params)
    assert out.shape == (N, K)
    # bf16 matmul inputs -> compare with tolerance against the f32 reference.
    ok = jnp.all(jnp.abs(out - ref) <= 2e-2 + 2e-2 * jnp.abs(ref))
    assert bool(ok), (out, ref, jnp.max(jnp.abs(out - ref)))
    print("KERNEL_OK")
</pallas_src>

<mosaic_0001>
module attributes {stable_mosaic.version = 11 : i64} {
  func.func @_gate_kernel(%arg0: i32, %arg1: memref<512x36xbf16, #tpu.memory_space<vmem>>, %arg2: memref<36x64xbf16, #tpu.memory_space<vmem>>, %arg3: memref<3x64xf32, #tpu.memory_space<vmem>>, %arg4: memref<64x128xf32, #tpu.memory_space<vmem>>, %arg5: memref<2x128xf32, #tpu.memory_space<vmem>>) attributes {dimension_semantics = [#tpu.dimension_semantics<parallel>], iteration_bounds = array<i64: 1>, scalar_prefetch = 0 : i64, scratch_operands = 0 : i64, tpu.core_type = #tpu.core_type<tc>, window_params = [{transform_indices = @transform_0, window_bounds = array<i64: 512, 36>}, {pipeline_mode = #tpu.pipeline_mode<synchronous>, transform_indices = @transform_1, window_bounds = array<i64: 36, 64>}, {pipeline_mode = #tpu.pipeline_mode<synchronous>, transform_indices = @transform_2, window_bounds = array<i64: 3, 64>}, {pipeline_mode = #tpu.pipeline_mode<synchronous>, transform_indices = @transform_3, window_bounds = array<i64: 64, 128>}, {transform_indices = @transform_4, window_bounds = array<i64: 2, 128>}]} {
    %c0 = arith.constant 0 : index
    %c0_0 = arith.constant 0 : index
    %0 = vector.load %arg1[%c0, %c0_0] : memref<512x36xbf16, #tpu.memory_space<vmem>>, vector<512x36xbf16>
    %c0_1 = arith.constant 0 : index
    %c0_2 = arith.constant 0 : index
    %1 = vector.load %arg2[%c0_1, %c0_2] : memref<36x64xbf16, #tpu.memory_space<vmem>>, vector<36x64xbf16>
    %cst = arith.constant dense<0.000000e+00> : vector<512x64xf32>
    %2 = tpu.matmul %0, %1, %cst {dimension_numbers = #tpu.dot_dimension_numbers<[1], [0], [0], [1], [0, 0, 1, 1], [], []>} : vector<512x36xbf16>, vector<36x64xbf16>, vector<512x64xf32> -> vector<512x64xf32>
    %c0_3 = arith.constant 0 : index
    %c0_4 = arith.constant 0 : index
    %3 = vector.load %arg3[%c0_3, %c0_4] : memref<3x64xf32, #tpu.memory_space<vmem>>, vector<1x64xf32>
    %4 = vector.broadcast %3 : vector<1x64xf32> to vector<512x64xf32>
    %5 = arith.addf %2, %4 : vector<512x64xf32>
    %cst_5 = arith.constant 0.000000e+00 : f32
    %6 = vector.broadcast %cst_5 : f32 to vector<512x64xf32>
    %7 = arith.maximumf %5, %6 : vector<512x64xf32>
    %8 = vector.shape_cast %7 : vector<512x64xf32> to vector<2x256x64xf32>
    %cst_6 = arith.constant dense<0.000000e+00> : vector<2x64xf32>
    %9 = vector.multi_reduction <add>, %8, %cst_6 [1] : vector<2x256x64xf32> to vector<2x64xf32>
    %c1 = arith.constant 1 : index
    %c0_7 = arith.constant 0 : index
    %10 = vector.load %arg3[%c1, %c0_7] : memref<3x64xf32, #tpu.memory_space<vmem>>, vector<1x64xf32>
    %c2 = arith.constant 2 : index
    %c0_8 = arith.constant 0 : index
    %11 = vector.load %arg3[%c2, %c0_8] : memref<3x64xf32, #tpu.memory_space<vmem>>, vector<1x64xf32>
    %12 = vector.broadcast %10 : vector<1x64xf32> to vector<2x64xf32>
    %13 = arith.mulf %9, %12 : vector<2x64xf32>
    %14 = vector.broadcast %11 : vector<1x64xf32> to vector<2x64xf32>
    %15 = arith.addf %13, %14 : vector<2x64xf32>
    %cst_9 = arith.constant 0.000000e+00 : f32
    %16 = vector.broadcast %cst_9 : f32 to vector<2x64xf32>
    %17 = arith.maximumf %15, %16 : vector<2x64xf32>
    %c0_10 = arith.constant 0 : index
    %c0_11 = arith.constant 0 : index
    %18 = vector.load %arg4[%c0_10, %c0_11] : memref<64x128xf32, #tpu.memory_space<vmem>>, vector<64x128xf32>
    %cst_12 = arith.constant dense<0.000000e+00> : vector<2x128xf32>
    %19 = tpu.matmul %17, %18, %cst_12 {dimension_numbers = #tpu.dot_dimension_numbers<[1], [0], [0], [1], [0, 0, 1, 1], [], []>} : vector<2x64xf32>, vector<64x128xf32>, vector<2x128xf32> -> vector<2x128xf32>
    %c0_13 = arith.constant 0 : index
    %c0_14 = arith.constant 0 : index
    %20 = vector.load %arg5[%c0_13, %c0_14] : memref<2x128xf32, #tpu.memory_space<vmem>>, vector<2x128xf32>
    tpu.vector_store %arg5[%c0_13, %c0_14], %19 {strides = array<i32>} : memref<2x128xf32, #tpu.memory_space<vmem>>, vector<2x128xf32>,
    return
  }
  func.func @transform_0(%arg0: i32) -> (i32, i32) {
    %c0_i32 = arith.constant 0 : i32
    %c0_i32_0 = arith.constant 0 : i32
    return %arg0, %c0_i32 : i32, i32
  }
  func.func @transform_1(%arg0: i32) -> (i32, i32) {
    %c0_i32 = arith.constant 0 : i32
    %c0_i32_0 = arith.constant 0 : i32
    %c0_i32_1 = arith.constant 0 : i32
    return %c0_i32, %c0_i32_0 : i32, i32
  }
  func.func @transform_2(%arg0: i32) -> (i32, i32) {
    %c0_i32 = arith.constant 0 : i32
    %c0_i32_0 = arith.constant 0 : i32
    %c0_i32_1 = arith.constant 0 : i32
    return %c0_i32, %c0_i32_0 : i32, i32
  }
  func.func @transform_3(%arg0: i32) -> (i32, i32) {
    %c0_i32 = arith.constant 0 : i32
    %c0_i32_0 = arith.constant 0 : i32
    %c0_i32_1 = arith.constant 0 : i32
    return %c0_i32, %c0_i32_0 : i32, i32
  }
  func.func @transform_4(%arg0: i32) -> (i32, i32) {
    %c0_i32 = arith.constant 0 : i32
    %c0_i32_0 = arith.constant 0 : i32
    return %arg0, %c0_i32 : i32, i32
  }
}

</mosaic_0001>

<llo_original>
// kernel: tpu_custom_call.1
$region0: #{tpu_custom_call.1}
  #allocation0 [shape = 'u32[]', space=smem, size = 0x4, offset = 0x4, fixed_abs, tag = 'smem constant byte address 0x4 - core index']
  #allocation1 [shape = 'u32[72,128]{1,0:T(1,128)}', space=vmem, size = 0x9000, scoped, tag = 'internal scratch']
  %s0 = inlined_call_operand.vmem [shape: bf16[512,36], index: 0, kind: input, shape index: {}]
  %s1 = inlined_call_operand.vmem [shape: bf16[36,64], index: 1, kind: input, shape index: {}]
  %s2 = inlined_call_operand.vmem [shape: f32[3,64], index: 2, kind: input, shape index: {}]
  %s3 = inlined_call_operand.vmem [shape: f32[64,128], index: 3, kind: input, shape index: {}]
  %s4 = inlined_call_operand.hbm [shape: f32[2,128], index: 4, kind: output, shape index: {}]
  %s5 = sld [smem:[#allocation0]]
  $region26: #{tpu_custom_call.1} parent=0
    _
  %s7 = ssub.s32 1, %s5
  %s8 = scalar_select 0, %s7, %s5
  $region1: #{tpu_custom_call.1} parent=0
    #allocation2 [shape = 'u8[1024]{0}', space=vmem, size = 0x400, scoped, tag = 'output window, operand 0, single buffered']
    #allocation3 [shape = 's32[1]{0}', space=sflag, size = 0x4, scoped, tag = 'scoped memory for tpu_custom_call.1']
    %9 = vsyncpa [#allocation3], 0
    // Predicated region
    $region2: #{tpu_custom_call.1} parent=1 // pred_check
      _
    $region3: #{tpu_custom_call.1} parent=1 // pred_check_branch
      %11 = sbr.rel (0) target = $region5
    $region4: #{tpu_custom_call.1} parent=1 // pred_region
      _
    $region5: #{tpu_custom_call.1} parent=1 // pred_fallthru
      _
    // Predicated region
    $region6: #{tpu_custom_call.1} parent=1 // pred_check
      _
    $region7: #{tpu_custom_call.1} parent=1 // pred_check_branch
      %13 = sbr.rel (0) target = $region9
    $region8: #{tpu_custom_call.1} parent=1 // pred_region
      _
    $region9: #{tpu_custom_call.1} parent=1 // pred_fallthru
      _
    // Predicated region
    $region10: #{tpu_custom_call.1} parent=1 // pred_check
      _
    $region11: #{tpu_custom_call.1} parent=1 // pred_check_branch
      %15 = sbr.rel (0) target = $region13
    $region12: #{tpu_custom_call.1} parent=1 // pred_region
      _
    $region13: #{tpu_custom_call.1} parent=1 // pred_fallthru
      _
    // Predicated region
    $region14: #{tpu_custom_call.1} parent=1 // pred_check
      _
    $region15: #{tpu_custom_call.1} parent=1 // pred_check_branch
      %17 = sbr.rel (0) target = $region17
    $region16: #{tpu_custom_call.1} parent=1 // pred_region
      _
    $region17: #{tpu_custom_call.1} parent=1 // pred_fallthru
      _
    %v19 = vld [vmem:[%s0] sm:$0xf]
    %v20 = vld [vmem:[%s0 + $0x4] sm:$0xf]
    %v21 = vld [vmem:[%s0 + $0x8] sm:$0xf]
    %v22 = vld [vmem:[%s0 + $0xc] sm:$0xf]
    %v23 = vld [vmem:[%s0 + $0x10] sm:$0xf]
    %v24 = vld [vmem:[%s0 + $0x14] sm:$0xf]
    %v25 = vld [vmem:[%s0 + $0x18] sm:$0xf]
    %v26 = vld [vmem:[%s0 + $0x1c] sm:$0xf]
    %v27 = vld [vmem:[%s0 + $0x20] sm:$0xf]
    %v28 = vld [vmem:[%s0 + $0x24] sm:$0xf]
    %v29 = vld [vmem:[%s0 + $0x28] sm:$0xf]
    %v30 = vld [vmem:[%s0 + $0x2c] sm:$0xf]
    %v31 = vld [vmem:[%s0 + $0x30] sm:$0xf]
    %v32 = vld [vmem:[%s0 + $0x34] sm:$0xf]
    %v33 = vld [vmem:[%s0 + $0x38] sm:$0xf]
    %v34 = vld [vmem:[%s0 + $0x3c] sm:$0xf]
    %v35 = vld [vmem:[%s0 + $0x40] sm:$0xf]
    %v36 = vld [vmem:[%s0 + $0x44] sm:$0xf]
    %v37 = vld [vmem:[%s0 + $0x48] sm:$0xf]
    %v38 = vld [vmem:[%s0 + $0x4c] sm:$0xf]
    %v39 = vld [vmem:[%s0 + $0x50] sm:$0xf]
    %v40 = vld [vmem:[%s0 + $0x54] sm:$0xf]
    %v41 = vld [vmem:[%s0 + $0x58] sm:$0xf]
    %v42 = vld [vmem:[%s0 + $0x5c] sm:$0xf]
    %v43 = vld [vmem:[%s0 + $0x60] sm:$0xf]
    %v44 = vld [vmem:[%s0 + $0x64] sm:$0xf]
    %v45 = vld [vmem:[%s0 + $0x68] sm:$0xf]
    %v46 = vld [vmem:[%s0 + $0x6c] sm:$0xf]
    %v47 = vld [vmem:[%s0 + $0x70] sm:$0xf]
    %v48 = vld [vmem:[%s0 + $0x74] sm:$0xf]
    %v49 = vld [vmem:[%s0 + $0x78] sm:$0xf]
    %v50 = vld [vmem:[%s0 + $0x7c] sm:$0xf]
    %v51 = vld [vmem:[%s0 + $0x80] sm:$0xf]
    %v52 = vld [vmem:[%s0 + $0x84] sm:$0xf]
    %v53 = vld [vmem:[%s0 + $0x88] sm:$0xf]
    %v54 = vld [vmem:[%s0 + $0x8c] sm:$0xf]
    %v55 = vld [vmem:[%s0 + $0x90] sm:$0xf]
    %v56 = vld [vmem:[%s0 + $0x94] sm:$0xf]
    %v57 = vld [vmem:[%s0 + $0x98] sm:$0xf]
    %v58 = vld [vmem:[%s0 + $0x9c] sm:$0xf]
    %v59 = vld [vmem:[%s0 + $0xa0] sm:$0xf]
    %v60 = vld [vmem:[%s0 + $0xa4] sm:$0xf]
    %v61 = vld [vmem:[%s0 + $0xa8] sm:$0xf]
    %v62 = vld [vmem:[%s0 + $0xac] sm:$0xf]
    %v63 = vld [vmem:[%s0 + $0xb0] sm:$0xf]
    %v64 = vld [vmem:[%s0 + $0xb4] sm:$0xf]
    %v65 = vld [vmem:[%s0 + $0xb8] sm:$0xf]
    %v66 = vld [vmem:[%s0 + $0xbc] sm:$0xf]
    %v67 = vld [vmem:[%s0 + $0xc0] sm:$0xf]
    %v68 = vld [vmem:[%s0 + $0xc4] sm:$0xf]
    %v69 = vld [vmem:[%s0 + $0xc8] sm:$0xf]
    %v70 = vld [vmem:[%s0 + $0xcc] sm:$0xf]
    %v71 = vld [vmem:[%s0 + $0xd0] sm:$0xf]
    %v72 = vld [vmem:[%s0 + $0xd4] sm:$0xf]
    %v73 = vld [vmem:[%s0 + $0xd8] sm:$0xf]
    %v74 = vld [vmem:[%s0 + $0xdc] sm:$0xf]
    %v75 = vld [vmem:[%s0 + $0xe0] sm:$0xf]
    %v76 = vld [vmem:[%s0 + $0xe4] sm:$0xf]
    %v77 = vld [vmem:[%s0 + $0xe8] sm:$0xf]
    %v78 = vld [vmem:[%s0 + $0xec] sm:$0xf]
    %v79 = vld [vmem:[%s0 + $0xf0] sm:$0xf]
    %v80 = vld [vmem:[%s0 + $0xf4] sm:$0xf]
    %v81 = vld [vmem:[%s0 + $0xf8] sm:$0xf]
    %v82 = vld [vmem:[%s0 + $0xfc] sm:$0xf]
    %v83 = vld [vmem:[%s1] sm:$0xf]
    %v84 = vld [vmem:[%s1 + $0x4] sm:$0xf]
    %v85 = vld [vmem:[%s1 + $0x8] sm:$0xf]
    %v86 = vld [vmem:[%s1 + $0xc] sm:$0xf]
    %v87 = vld [vmem:[%s1 + $0x10] sm:$0x3]
    %v88 = vld [vmem:[%s2] sm:$0x1]
    %v89 = vperm.slane %v88, 0
    %v154 = vunpack.c.l.b16 %v19
    %v155 = vunpack.c.l.b16 %v20
    %v156 = vunpack.c.l.b16 %v21
    %v157 = vunpack.c.l.b16 %v22
    %v158 = vunpack.c.l.b16 %v23
    %v159 = vunpack.c.l.b16 %v24
    %v160 = vunpack.c.l.b16 %v25
    %v161 = vunpack.c.l.b16 %v26
    %v162 = vunpack.c.l.b16 %v27
    %v163 = vunpack.c.l.b16 %v28
    %v164 = vunpack.c.l.b16 %v29
    %v165 = vunpack.c.l.b16 %v30
    %v166 = vunpack.c.l.b16 %v31
    %v167 = vunpack.c.l.b16 %v32
    %v168 = vunpack.c.l.b16 %v33
    %v169 = vunpack.c.l.b16 %v34
    %v170 = vunpack.c.l.b16 %v35
    %v171 = vunpack.c.l.b16 %v36
    %v172 = vunpack.c.l.b16 %v37
    %v173 = vunpack.c.l.b16 %v38
    %v174 = vunpack.c.l.b16 %v39
    %v175 = vunpack.c.l.b16 %v40
    %v176 = vunpack.c.l.b16 %v41
    %v177 = vunpack.c.l.b16 %v42
    %v178 = vunpack.c.l.b16 %v43
    %v179 = vunpack.c.l.b16 %v44
    %v180 = vunpack.c.l.b16 %v45
    %v181 = vunpack.c.l.b16 %v46
    %v182 = vunpack.c.l.b16 %v47
    %v183 = vunpack.c.l.b16 %v48
    %v184 = vunpack.c.l.b16 %v49
    %v185 = vunpack.c.l.b16 %v50
    %v186 = vunpack.c.l.b16 %v51
    %v187 = vunpack.c.l.b16 %v52
    %v188 = vunpack.c.l.b16 %v53
    %v189 = vunpack.c.l.b16 %v54
    %v190 = vunpack.c.l.b16 %v55
    %v191 = vunpack.c.l.b16 %v56
    %v192 = vunpack.c.l.b16 %v57
    %v193 = vunpack.c.l.b16 %v58
    %v194 = vunpack.c.l.b16 %v59
    %v195 = vunpack.c.l.b16 %v60
    %v196 = vunpack.c.l.b16 %v61
    %v197 = vunpack.c.l.b16 %v62
    %v198 = vunpack.c.l.b16 %v63
    %v199 = vunpack.c.l.b16 %v64
    %v200 = vunpack.c.l.b16 %v65
    %v201 = vunpack.c.l.b16 %v66
    %v202 = vunpack.c.l.b16 %v67
    %v203 = vunpack.c.l.b16 %v68
    %v204 = vunpack.c.l.b16 %v69
    %v205 = vunpack.c.l.b16 %v70
    %v206 = vunpack.c.l.b16 %v71
    %v207 = vunpack.c.l.b16 %v72
    %v208 = vunpack.c.l.b16 %v73
    %v209 = vunpack.c.l.b16 %v74
    %v210 = vunpack.c.l.b16 %v75
    %v211 = vunpack.c.l.b16 %v76
    %v212 = vunpack.c.l.b16 %v77
    %v213 = vunpack.c.l.b16 %v78
    %v214 = vunpack.c.l.b16 %v79
    %v215 = vunpack.c.l.b16 %v80
    %v216 = vunpack.c.l.b16 %v81
    %v217 = vunpack.c.l.b16 %v82
    %v218 = vpack.c.b16 %v155, %v154
    %v219 = vpack.c.b16 %v157, %v156
    %v220 = vpack.c.b16 %v159, %v158
    %v221 = vpack.c.b16 %v161, %v160
    %v222 = vpack.c.b16 %v163, %v162
    %v223 = vpack.c.b16 %v165, %v164
    %v224 = vpack.c.b16 %v167, %v166
    %v225 = vpack.c.b16 %v169, %v168
    %v226 = vpack.c.b16 %v171, %v170
    %v227 = vpack.c.b16 %v173, %v172
    %v228 = vpack.c.b16 %v175, %v174
    %v229 = vpack.c.b16 %v177, %v176
    %v230 = vpack.c.b16 %v179, %v178
    %v231 = vpack.c.b16 %v181, %v180
    %v232 = vpack.c.b16 %v183, %v182
    %v233 = vpack.c.b16 %v185, %v184
    %v234 = vpack.c.b16 %v187, %v186
    %v235 = vpack.c.b16 %v189, %v188
    %v236 = vpack.c.b16 %v191, %v190
    %v237 = vpack.c.b16 %v193, %v192
    %v238 = vpack.c.b16 %v195, %v194
    %v239 = vpack.c.b16 %v197, %v196
    %v240 = vpack.c.b16 %v199, %v198
    %v241 = vpack.c.b16 %v201, %v200
    %v242 = vpack.c.b16 %v203, %v202
    %v243 = vpack.c.b16 %v205, %v204
    %v244 = vpack.c.b16 %v207, %v206
    %v245 = vpack.c.b16 %v209, %v208
    %v246 = vpack.c.b16 %v211, %v210
    %v247 = vpack.c.b16 %v213, %v212
    %v248 = vpack.c.b16 %v215, %v214
    %v249 = vpack.c.b16 %v217, %v216
    %v255 = vunpack.c.l.b16 %v83
    %v256 = vunpack.c.l.b16 %v84
    %v257 = vunpack.c.l.b16 %v85
    %v258 = vunpack.c.l.b16 %v86
    %v259 = vunpack.c.l.b16 %v87
    %v260 = vpack.c.b16 %v256, %v255
    %v261 = vpack.c.b16 %v258, %v257
    %v262 = vpack.c.b16 %v259, %v259
    %vm265 = vcmask 293888
    %v267 = vsel %vm265, %v218, 0
    %v270 = vsel %vm265, %v219, 0
    %v273 = vsel %vm265, %v220, 0
    %v276 = vsel %vm265, %v221, 0
    %v279 = vsel %vm265, %v222, 0
    %v282 = vsel %vm265, %v223, 0
    %v285 = vsel %vm265, %v224, 0
    %v288 = vsel %vm265, %v225, 0
    %v291 = vsel %vm265, %v226, 0
    %v294 = vsel %vm265, %v227, 0
    %v297 = vsel %vm265, %v228, 0
    %v300 = vsel %vm265, %v229, 0
    %v303 = vsel %vm265, %v230, 0
    %v306 = vsel %vm265, %v231, 0
    %v309 = vsel %vm265, %v232, 0
    %v312 = vsel %vm265, %v233, 0
    %v315 = vsel %vm265, %v234, 0
    %v318 = vsel %vm265, %v235, 0
    %v321 = vsel %vm265, %v236, 0
    %v324 = vsel %vm265, %v237, 0
    %v327 = vsel %vm265, %v238, 0
    %v330 = vsel %vm265, %v239, 0
    %v333 = vsel %vm265, %v240, 0
    %v336 = vsel %vm265, %v241, 0
    %v339 = vsel %vm265, %v242, 0
    %v342 = vsel %vm265, %v243, 0
    %v345 = vsel %vm265, %v244, 0
    %v348 = vsel %vm265, %v245, 0
    %v351 = vsel %vm265, %v246, 0
    %v354 = vsel %vm265, %v247, 0
    %v357 = vsel %vm265, %v248, 0
    %v360 = vsel %vm265, %v249, 0
    %vm362 = vcmask 1041408
    %v364 = vsel %vm362, %v262, 0
    %366 = vmatpush.bf16.msra.mxu0 0
    %367 = vmatpush.bf16.msra.mxu0 0
    %368 = vmatpush.bf16.msra.mxu0 0
    %369 = vmatpush.bf16.msra.mxu0 0
    %370 = vmatpush.bf16.msra.mxu0 0
    %371 = vmatpush.bf16.msra.mxu0 %v364
    %372 = vmatpush.bf16.msra.mxu0 %v261
    %373 = vmatpush.bf16.msra.mxu0 %v260
    %374 = vmatmul.bf16.gmra.mxu0 %v267
    %v375 = vpop.f32.mrf.mxu0
    %v376 = vadd.f32 %v89, %v375
    %v377 = vpop.f32.mrf.mxu0
    %v378 = vadd.f32 %v89, %v377
    %379 = vmatmul.bf16.gmra.mxu0 %v270
    %v380 = vpop.f32.mrf.mxu0
    %v381 = vadd.f32 %v89, %v380
    %v382 = vpop.f32.mrf.mxu0
    %v383 = vadd.f32 %v89, %v382
    %384 = vmatmul.bf16.gmra.mxu0 %v273
    %v385 = vpop.f32.mrf.mxu0
    %v386 = vadd.f32 %v89, %v385
    %v387 = vpop.f32.mrf.mxu0
    %v388 = vadd.f32 %v89, %v387
    %389 = vmatmul.bf16.gmra.mxu0 %v276
    %v390 = vpop.f32.mrf.mxu0
    %v391 = vadd.f32 %v89, %v390
    %v392 = vpop.f32.mrf.mxu0
    %v393 = vadd.f32 %v89, %v392
    %394 = vmatmul.bf16.gmra.mxu0 %v279
    %v395 = vpop.f32.mrf.mxu0
    %v396 = vadd.f32 %v89, %v395
    %v397 = vpop.f32.mrf.mxu0
    %v398 = vadd.f32 %v89, %v397
    %399 = vmatmul.bf16.gmra.mxu0 %v282
    %v400 = vpop.f32.mrf.mxu0
    %v401 = vadd.f32 %v89, %v400
    %v402 = vpop.f32.mrf.mxu0
    %v403 = vadd.f32 %v89, %v402
    %404 = vmatmul.bf16.gmra.mxu0 %v285
    %v405 = vpop.f32.mrf.mxu0
    %v406 = vadd.f32 %v89, %v405
    %v407 = vpop.f32.mrf.mxu0
    %v408 = vadd.f32 %v89, %v407
    %409 = vmatmul.bf16.gmra.mxu0 %v288
    %v410 = vpop.f32.mrf.mxu0
    %v411 = vadd.f32 %v89, %v410
    %v412 = vpop.f32.mrf.mxu0
    %v413 = vadd.f32 %v89, %v412
    %414 = vmatmul.bf16.gmra.mxu0 %v291
    %v415 = vpop.f32.mrf.mxu0
    %v416 = vadd.f32 %v89, %v415
    %v417 = vpop.f32.mrf.mxu0
    %v418 = vadd.f32 %v89, %v417
    %419 = vmatmul.bf16.gmra.mxu0 %v294
    %v420 = vpop.f32.mrf.mxu0
    %v421 = vadd.f32 %v89, %v420
    %v422 = vpop.f32.mrf.mxu0
    %v423 = vadd.f32 %v89, %v422
    %424 = vmatmul.bf16.gmra.mxu0 %v297
    %v425 = vpop.f32.mrf.mxu0
    %v426 = vadd.f32 %v89, %v425
    %v427 = vpop.f32.mrf.mxu0
    %v428 = vadd.f32 %v89, %v427
    %429 = vmatmul.bf16.gmra.mxu0 %v300
    %v430 = vpop.f32.mrf.mxu0
    %v431 = vadd.f32 %v89, %v430
    %v432 = vpop.f32.mrf.mxu0
    %v433 = vadd.f32 %v89, %v432
    %434 = vmatmul.bf16.gmra.mxu0 %v303
    %v435 = vpop.f32.mrf.mxu0
    %v436 = vadd.f32 %v89, %v435
    %v437 = vpop.f32.mrf.mxu0
    %v438 = vadd.f32 %v89, %v437
    %439 = vmatmul.bf16.gmra.mxu0 %v306
    %v440 = vpop.f32.mrf.mxu0
    %v441 = vadd.f32 %v89, %v440
    %v442 = vpop.f32.mrf.mxu0
    %v443 = vadd.f32 %v89, %v442
    %444 = vmatmul.bf16.gmra.mxu0 %v309
    %v445 = vpop.f32.mrf.mxu0
    %v446 = vadd.f32 %v89, %v445
    %v447 = vpop.f32.mrf.mxu0
    %v448 = vadd.f32 %v89, %v447
    %449 = vmatmul.bf16.gmra.mxu0 %v312
    %v450 = vpop.f32.mrf.mxu0
    %v451 = vadd.f32 %v89, %v450
    %v452 = vpop.f32.mrf.mxu0
    %v453 = vadd.f32 %v89, %v452
    %454 = vmatmul.bf16.gmra.mxu0 %v315
    %v455 = vpop.f32.mrf.mxu0
    %v456 = vadd.f32 %v89, %v455
    %v457 = vpop.f32.mrf.mxu0
    %v458 = vadd.f32 %v89, %v457
    %459 = vmatmul.bf16.gmra.mxu0 %v318
    %v460 = vpop.f32.mrf.mxu0
    %v461 = vadd.f32 %v89, %v460
    %v462 = vpop.f32.mrf.mxu0
    %v463 = vadd.f32 %v89, %v462
    %464 = vmatmul.bf16.gmra.mxu0 %v321
    %v465 = vpop.f32.mrf.mxu0
    %v466 = vadd.f32 %v89, %v465
    %v467 = vpop.f32.mrf.mxu0
    %v468 = vadd.f32 %v89, %v467
    %469 = vmatmul.bf16.gmra.mxu0 %v324
    %v470 = vpop.f32.mrf.mxu0
    %v471 = vadd.f32 %v89, %v470
    %v472 = vpop.f32.mrf.mxu0
    %v473 = vadd.f32 %v89, %v472
    %474 = vmatmul.bf16.gmra.mxu0 %v327
    %v475 = vpop.f32.mrf.mxu0
    %v476 = vadd.f32 %v89, %v475
    %v477 = vpop.f32.mrf.mxu0
    %v478 = vadd.f32 %v89, %v477
    %479 = vmatmul.bf16.gmra.mxu0 %v330
    %v480 = vpop.f32.mrf.mxu0
    %v481 = vadd.f32 %v89, %v480
    %v482 = vpop.f32.mrf.mxu0
    %v483 = vadd.f32 %v89, %v482
    %484 = vmatmul.bf16.gmra.mxu0 %v333
    %v485 = vpop.f32.mrf.mxu0
    %v486 = vadd.f32 %v89, %v485
    %v487 = vpop.f32.mrf.mxu0
    %v488 = vadd.f32 %v89, %v487
    %489 = vmatmul.bf16.gmra.mxu0 %v336
    %v490 = vpop.f32.mrf.mxu0
    %v491 = vadd.f32 %v89, %v490
    %v492 = vpop.f32.mrf.mxu0
    %v493 = vadd.f32 %v89, %v492
    %494 = vmatmul.bf16.gmra.mxu0 %v339
    %v495 = vpop.f32.mrf.mxu0
    %v496 = vadd.f32 %v89, %v495
    %v497 = vpop.f32.mrf.mxu0
    %v498 = vadd.f32 %v89, %v497
    %499 = vmatmul.bf16.gmra.mxu0 %v342
    %v500 = vpop.f32.mrf.mxu0
    %v501 = vadd.f32 %v89, %v500
    %v502 = vpop.f32.mrf.mxu0
    %v503 = vadd.f32 %v89, %v502
    %504 = vmatmul.bf16.gmra.mxu0 %v345
    %v505 = vpop.f32.mrf.mxu0
    %v506 = vadd.f32 %v89, %v505
    %v507 = vpop.f32.mrf.mxu0
    %v508 = vadd.f32 %v89, %v507
    %509 = vmatmul.bf16.gmra.mxu0 %v348
    %v510 = vpop.f32.mrf.mxu0
    %v511 = vadd.f32 %v89, %v510
    %v512 = vpop.f32.mrf.mxu0
    %v513 = vadd.f32 %v89, %v512
    %514 = vmatmul.bf16.gmra.mxu0 %v351
    %v515 = vpop.f32.mrf.mxu0
    %v516 = vadd.f32 %v89, %v515
    %v517 = vpop.f32.mrf.mxu0
    %v518 = vadd.f32 %v89, %v517
    %519 = vmatmul.bf16.gmra.mxu0 %v354
    %v520 = vpop.f32.mrf.mxu0
    %v521 = vadd.f32 %v89, %v520
    %v522 = vpop.f32.mrf.mxu0
    %v523 = vadd.f32 %v89, %v522
    %524 = vmatmul.bf16.gmra.mxu0 %v357
    %v525 = vpop.f32.mrf.mxu0
    %v526 = vadd.f32 %v89, %v525
    %v527 = vpop.f32.mrf.mxu0
    %v528 = vadd.f32 %v89, %v527
    %529 = vmatmul.bf16.gmra.mxu0 %v360
    %v530 = vpop.f32.mrf.mxu0
    %v531 = vadd.f32 %v89, %v530
    %v532 = vpop.f32.mrf.mxu0
    %v533 = vadd.f32 %v89, %v532
    %534 = vdwg.mxu0
    %v535 = vmax.f32 %v376, 0.0
    %v536 = vmax.f32 %v378, 0.0
    %v537 = vmax.f32 %v381, 0.0
    %v538 = vmax.f32 %v383, 0.0
    %v539 = vmax.f32 %v386, 0.0
    %v540 = vmax.f32 %v388, 0.0
    %v541 = vmax.f32 %v391, 0.0
    %v542 = vmax.f32 %v393, 0.0
    %v543 = vmax.f32 %v396, 0.0
    %v544 = vmax.f32 %v398, 0.0
    %v545 = vmax.f32 %v401, 0.0
    %v546 = vmax.f32 %v403, 0.0
    %v547 = vmax.f32 %v406, 0.0
    %v548 = vmax.f32 %v408, 0.0
    %v549 = vmax.f32 %v411, 0.0
    %v550 = vmax.f32 %v413, 0.0
    %v551 = vmax.f32 %v416, 0.0
    %v552 = vmax.f32 %v418, 0.0
    %v553 = vmax.f32 %v421, 0.0
    %v554 = vmax.f32 %v423, 0.0
    %v555 = vmax.f32 %v426, 0.0
    %v556 = vmax.f32 %v428, 0.0
    %v557 = vmax.f32 %v431, 0.0
    %v558 = vmax.f32 %v433, 0.0
    %v559 = vmax.f32 %v436, 0.0
    %v560 = vmax.f32 %v438, 0.0
    %v561 = vmax.f32 %v441, 0.0
    %v562 = vmax.f32 %v443, 0.0
    %v563 = vmax.f32 %v446, 0.0
    %v564 = vmax.f32 %v448, 0.0
    %v565 = vmax.f32 %v451, 0.0
    %v566 = vmax.f32 %v453, 0.0
    %v567 = vmax.f32 %v456, 0.0
    %v568 = vmax.f32 %v458, 0.0
    %v569 = vmax.f32 %v461, 0.0
    %v570 = vmax.f32 %v463, 0.0
    %v571 = vmax.f32 %v466, 0.0
    %v572 = vmax.f32 %v468, 0.0
    %v573 = vmax.f32 %v471, 0.0
    %v574 = vmax.f32 %v473, 0.0
    %v575 = vmax.f32 %v476, 0.0
    %v576 = vmax.f32 %v478, 0.0
    %v577 = vmax.f32 %v481, 0.0
    %v578 = vmax.f32 %v483, 0.0
    %v579 = vmax.f32 %v486, 0.0
    %v580 = vmax.f32 %v488, 0.0
    %v581 = vmax.f32 %v491, 0.0
    %v582 = vmax.f32 %v493, 0.0
    %v583 = vmax.f32 %v496, 0.0
    %v584 = vmax.f32 %v498, 0.0
    %v585 = vmax.f32 %v501, 0.0
    %v586 = vmax.f32 %v503, 0.0
    %v587 = vmax.f32 %v506, 0.0
    %v588 = vmax.f32 %v508, 0.0
    %v589 = vmax.f32 %v511, 0.0
    %v590 = vmax.f32 %v513, 0.0
    %v591 = vmax.f32 %v516, 0.0
    %v592 = vmax.f32 %v518, 0.0
    %v593 = vmax.f32 %v521, 0.0
    %v594 = vmax.f32 %v523, 0.0
    %v595 = vmax.f32 %v526, 0.0
    %v596 = vmax.f32 %v528, 0.0
    %v597 = vmax.f32 %v531, 0.0
    %v598 = vmax.f32 %v533, 0.0
    %vm599 = vcmask 523264
    %v600 = vsel %vm599, %v535, 0.0
    %v601 = vsel %vm599, %v536, 0.0
    %v602 = vadd.f32 %v600, %v601
    %v603 = vsel %vm599, %v537, 0.0
    %v604 = vadd.f32 %v602, %v603
    %v605 = vsel %vm599, %v538, 0.0
    %v606 = vadd.f32 %v604, %v605
    %v607 = vsel %vm599, %v539, 0.0
    %v608 = vadd.f32 %v606, %v607
    %v609 = vsel %vm599, %v540, 0.0
    %v610 = vadd.f32 %v608, %v609
    %v611 = vsel %vm599, %v541, 0.0
    %v612 = vadd.f32 %v610, %v611
    %v613 = vsel %vm599, %v542, 0.0
    %v614 = vadd.f32 %v612, %v613
    %v615 = vsel %vm599, %v543, 0.0
    %v616 = vadd.f32 %v614, %v615
    %v617 = vsel %vm599, %v544, 0.0
    %v618 = vadd.f32 %v616, %v617
    %v619 = vsel %vm599, %v545, 0.0
    %v620 = vadd.f32 %v618, %v619
    %v621 = vsel %vm599, %v546, 0.0
    %v622 = vadd.f32 %v620, %v621
    %v623 = vsel %vm599, %v547, 0.0
    %v624 = vadd.f32 %v622, %v623
    %v625 = vsel %vm599, %v548, 0.0
    %v626 = vadd.f32 %v624, %v625
    %v627 = vsel %vm599, %v549, 0.0
    %v628 = vadd.f32 %v626, %v627
    %v629 = vsel %vm599, %v550, 0.0
    %v630 = vadd.f32 %v628, %v629
    %v631 = vsel %vm599, %v551, 0.0
    %v632 = vadd.f32 %v630, %v631
    %v633 = vsel %vm599, %v552, 0.0
    %v634 = vadd.f32 %v632, %v633
    %v635 = vsel %vm599, %v553, 0.0
    %v636 = vadd.f32 %v634, %v635
    %v637 = vsel %vm599, %v554, 0.0
    %v638 = vadd.f32 %v636, %v637
    %v639 = vsel %vm599, %v555, 0.0
    %v640 = vadd.f32 %v638, %v639
    %v641 = vsel %vm599, %v556, 0.0
    %v642 = vadd.f32 %v640, %v641
    %v643 = vsel %vm599, %v557, 0.0
    %v644 = vadd.f32 %v642, %v643
    %v645 = vsel %vm599, %v558, 0.0
    %v646 = vadd.f32 %v644, %v645
    %v647 = vsel %vm599, %v559, 0.0
    %v648 = vadd.f32 %v646, %v647
    %v649 = vsel %vm599, %v560, 0.0
    %v650 = vadd.f32 %v648, %v649
    %v651 = vsel %vm599, %v561, 0.0
    %v652 = vadd.f32 %v650, %v651
    %v653 = vsel %vm599, %v562, 0.0
    %v654 = vadd.f32 %v652, %v653
    %v655 = vsel %vm599, %v563, 0.0
    %v656 = vadd.f32 %v654, %v655
    %v657 = vsel %vm599, %v564, 0.0
    %v658 = vadd.f32 %v656, %v657
    %v659 = vsel %vm599, %v565, 0.0
    %v660 = vadd.f32 %v658, %v659
    %v661 = vsel %vm599, %v566, 0.0
    %v662 = vadd.f32 %v660, %v661
    %v663 = vrot.slane %v662, 4
    %v664 = vadd.f32 %v662, %v663
    %v665 = vrot.slane %v664, 2
    %v666 = vadd.f32 %v664, %v665
    %v667 = vrot.slane %v666, 1
    %v668 = vadd.f32 %v666, %v667
    %v669 = vsel %vm599, %v567, 0.0
    %v670 = vsel %vm599, %v568, 0.0
    %v671 = vadd.f32 %v669, %v670
    %v672 = vsel %vm599, %v569, 0.0
    %v673 = vadd.f32 %v671, %v672
    %v674 = vsel %vm599, %v570, 0.0
    %v675 = vadd.f32 %v673, %v674
    %v676 = vsel %vm599, %v571, 0.0
    %v677 = vadd.f32 %v675, %v676
    %v678 = vsel %vm599, %v572, 0.0
    %v679 = vadd.f32 %v677, %v678
    %v680 = vsel %vm599, %v573, 0.0
    %v681 = vadd.f32 %v679, %v680
    %v682 = vsel %vm599, %v574, 0.0
    %v683 = vadd.f32 %v681, %v682
    %v684 = vsel %vm599, %v575, 0.0
    %v685 = vadd.f32 %v683, %v684
    %v686 = vsel %vm599, %v576, 0.0
    %v687 = vadd.f32 %v685, %v686
    %v688 = vsel %vm599, %v577, 0.0
    %v689 = vadd.f32 %v687, %v688
    %v690 = vsel %vm599, %v578, 0.0
    %v691 = vadd.f32 %v689, %v690
    %v692 = vsel %vm599, %v579, 0.0
    %v693 = vadd.f32 %v691, %v692
    %v694 = vsel %vm599, %v580, 0.0
    %v695 = vadd.f32 %v693, %v694
    %v696 = vsel %vm599, %v581, 0.0
    %v697 = vadd.f32 %v695, %v696
    %v698 = vsel %vm599, %v582, 0.0
    %v699 = vadd.f32 %v697, %v698
    %v700 = vsel %vm599, %v583, 0.0
    %v701 = vadd.f32 %v699, %v700
    %v702 = vsel %vm599, %v584, 0.0
    %v703 = vadd.f32 %v701, %v702
    %v704 = vsel %vm599, %v585, 0.0
    %v705 = vadd.f32 %v703, %v704
    %v706 = vsel %vm599, %v586, 0.0
    %v707 = vadd.f32 %v705, %v706
    %v708 = vsel %vm599, %v587, 0.0
    %v709 = vadd.f32 %v707, %v708
    %v710 = vsel %vm599, %v588, 0.0
    %v711 = vadd.f32 %v709, %v710
    %v712 = vsel %vm599, %v589, 0.0
    %v713 = vadd.f32 %v711, %v712
    %v714 = vsel %vm599, %v590, 0.0
    %v715 = vadd.f32 %v713, %v714
    %v716 = vsel %vm599, %v591, 0.0
    %v717 = vadd.f32 %v715, %v716
    %v718 = vsel %vm599, %v592, 0.0
    %v719 = vadd.f32 %v717, %v718
    %v720 = vsel %vm599, %v593, 0.0
    %v721 = vadd.f32 %v719, %v720
    %v722 = vsel %vm599, %v594, 0.0
    %v723 = vadd.f32 %v721, %v722
    %v724 = vsel %vm599, %v595, 0.0
    %v725 = vadd.f32 %v723, %v724
    %v726 = vsel %vm599, %v596, 0.0
    %v727 = vadd.f32 %v725, %v726
    %v728 = vsel %vm599, %v597, 0.0
    %v729 = vadd.f32 %v727, %v728
    %v730 = vsel %vm599, %v598, 0.0
    %v731 = vadd.f32 %v729, %v730
    %v732 = vrot.slane %v731, 4
    %v733 = vadd.f32 %v731, %v732
    %v734 = vrot.slane %v733, 2
    %v735 = vadd.f32 %v733, %v734
    %v736 = vrot.slane %v735, 1
    %v737 = vadd.f32 %v735, %v736
    %v738 = vld [vmem:[%s2 + $0x1] sm:$0x1]
    %v739 = vld [vmem:[%s2 + $0x2] sm:$0x1]
    %v740 = vperm.slane %v738, 0
    %v741 = vmul.f32 %v668, %v740
    %v742 = vmul.f32 %v737, %v740
    %v743 = vperm.slane %v739, 0
    %v744 = vadd.f32 %v741, %v743
    %v745 = vadd.f32 %v742, %v743
    %v746 = vmax.f32 %v744, 0.0
    %v747 = vmax.f32 %v745, 0.0
    %v748 = vld [vmem:[%s3] sm:$0xff]
    %v749 = vld [vmem:[%s3 + $0x8] sm:$0xff]
    %v750 = vld [vmem:[%s3 + $0x10] sm:$0xff]
    %v751 = vld [vmem:[%s3 + $0x18] sm:$0xff]
    %v752 = vld [vmem:[%s3 + $0x20] sm:$0xff]
    %v753 = vld [vmem:[%s3 + $0x28] sm:$0xff]
    %v754 = vld [vmem:[%s3 + $0x30] sm:$0xff]
    %v755 = vld [vmem:[%s3 + $0x38] sm:$0xff]
    %v758 = vrot.slane %v747, 7
    %vm759 = vcmask 1041409
    %v760 = vsel %vm759, %v758, %v746
    %v761 = vsel %vm599, %v760, 0
    %763 = vmatpush.msra.mxu0 0.0
    %764 = vmatpush.msra.mxu0 0.0
    %765 = vmatpush.msra.mxu0 0.0
    %766 = vmatpush.msra.mxu0 0.0
    %767 = vmatpush.msra.mxu0 0.0
    %768 = vmatpush.msra.mxu0 0.0
    %769 = vmatpush.msra.mxu0 0.0
    %770 = vmatpush.msra.mxu0 0.0
    %771 = vmatpush.msra.mxu0 %v755
    %772 = vmatpush.msra.mxu0 %v754
    %773 = vmatpush.msra.mxu0 %v753
    %774 = vmatpush.msra.mxu0 %v752
    %775 = vmatpush.msra.mxu0 %v751
    %776 = vmatpush.msra.mxu0 %v750
    %777 = vmatpush.msra.mxu0 %v749
    %778 = vmatpush.msra.mxu0 %v748
    %779 = vmatmul.f32.gmra.mxu0 %v761
    %v780 = vpop.f32.mrf.mxu0
    %v781 = vadd.f32 0.0, %v780
    %782 = vdwg.mxu0
    %783 = vst [vmem:[#allocation2] sm:$0x3] %v781
    // Predicated region
    $region18: #{tpu_custom_call.1} parent=1 // pred_check
      _
    $region19: #{tpu_custom_call.1} parent=1 // pred_check_branch
      %785 = sbr.rel (0) target = $region21
    $region20: #{tpu_custom_call.1} parent=1 // pred_region
      %787 = vsyncadd [#allocation3], 0
      %s789 = sshll.u32 [#allocation2], 4
      %s790 = int_to_ptr.vmem [resolvable:$true] %s789
      %s791 = sshll.u32 %s4, 4
      %s792 = int_to_ptr.hbm [resolvable:$true] %s791
      %794 = dma.vmem_to_hbm [thread:$0]  %s790, 32, %s792, [#allocation3]
    $region21: #{tpu_custom_call.1} parent=1 // pred_fallthru
      _
    // Predicated region
    $region22: #{tpu_custom_call.1} parent=1 // pred_check
      _
    $region23: #{tpu_custom_call.1} parent=1 // pred_check_branch
      %796 = sbr.rel (0) target = $region25
    $region24: #{tpu_custom_call.1} parent=1 // pred_region
      %798 = dma.done [#allocation3], 32
    $region25: #{tpu_custom_call.1} parent=1 // pred_fallthru
      _
    %799 = vsyncpa [#allocation3], 1

</llo_original>
